<compile_context>
chip_gen: v7x
topology: tpu7x:2x2x1
jax: 0.10.0
libtpu: 0.0.40
codegen_flags: <defaults>
</compile_context>

<pallas_src>
import jax
import jax.numpy as jnp
from jax.experimental import pallas as pl
from jax.experimental.pallas import tpu as pltpu

HIDDEN = 64          # LSTM hidden size fixed by the torch module
HP = 128             # lane-padded hidden size (one full vreg lane width)
NUM_OUTPUTS = 6


# ---------------------------------------------------------------------------
# Kernel
# ---------------------------------------------------------------------------
def _forward_kernel(x_ref, state_ref, w1_ref, w2h_ref, wg_ref, b_ref,
                    state_out_ref, heads_ref):
    # Packed bias row layout: [b1(128) | b2(128) | b_gates(512) | b_heads(128)]
    b1 = b_ref[:, 0:HP]
    b2 = b_ref[:, HP:2 * HP]
    bg = b_ref[:, 2 * HP:6 * HP]
    bh = b_ref[:, 6 * HP:7 * HP]

    x = x_ref[...]

    # fc1 / fc2, padded to 128 output lanes (pad weight cols + pad bias are 0,
    # so pad lanes come out as tanh(0) == 0.0 exactly).
    h1 = jnp.tanh(
        jnp.dot(x, w1_ref[...], preferred_element_type=jnp.float32) + b1)
    h2 = jnp.tanh(
        jnp.dot(h1, w2h_ref[:, 0:HP], preferred_element_type=jnp.float32) + b2)

    h0 = state_ref[:, 0:HP]        # (B,128); lanes 64:128 are zero
    c0 = state_ref[:, HP:2 * HP]   # (B,128); lanes 64:128 are zero

    # Single fused gate matmul: [h2 | h0] @ [[W_ih]; [W_hh]]  (+ folded bias).
    zcat = jnp.concatenate([h2, h0], axis=-1)                    # (B, 256)
    gates = jnp.dot(zcat, wg_ref[...],
                    preferred_element_type=jnp.float32) + bg     # (B, 512)

    # Gate blocks [i | f | g | o], each 128-lane (tile) aligned.
    i_g = jax.nn.sigmoid(gates[:, 0 * HP:1 * HP])
    f_g = jax.nn.sigmoid(gates[:, 1 * HP:2 * HP])
    g_g = jnp.tanh(gates[:, 2 * HP:3 * HP])
    o_g = jax.nn.sigmoid(gates[:, 3 * HP:4 * HP])

    # Pad lanes: c0 pad = 0 and g pad = tanh(0) = 0, so c_new/h_new pad lanes
    # remain exactly 0.0 and never leak into the real outputs.
    c_new = f_g * c0 + i_g * g_g
    h_new = o_g * jnp.tanh(c_new)

    # Packed new-state slab [h_pad(128) | c_pad(128)] -> lane-dense store.
    state_out_ref[:, 0:HP] = h_new
    state_out_ref[:, HP:2 * HP] = c_new

    # Fused heads [fc_out | value_branch], zero-padded to 128 output lanes.
    heads_ref[...] = (
        jnp.dot(h_new, w2h_ref[:, HP:2 * HP],
                preferred_element_type=jnp.float32) + bh)


# ---------------------------------------------------------------------------
# Wrapper
# ---------------------------------------------------------------------------
def custom_lstm_forward(x, packed, state):
    """x: (B,C,H,W) or (B,Din). state: packed (B, 2*HP) slab [h_pad | c_pad].

    Returns (logits, [h_n, c_n], value, new_state_slab).
    """
    B = x.shape[0]
    if x.ndim > 2:
        x = x.reshape(B, -1)
    x = x.astype(jnp.float32)

    vmem = pl.BlockSpec(memory_space=pltpu.MemorySpace.VMEM)
    state_out, heads = pl.pallas_call(
        _forward_kernel,
        out_shape=(jax.ShapeDtypeStruct((B, 2 * HP), jnp.float32),   # [h|c]
                   jax.ShapeDtypeStruct((B, HP), jnp.float32)),      # heads
        in_specs=[vmem] * 6,
        out_specs=(vmem, vmem),
        input_output_aliases={1: 0},   # reuse state HBM buffer for new state
    )(x, state, packed["w1p"], packed["w2h"], packed["wg"], packed["bias"])

    logits = heads[:, :NUM_OUTPUTS]
    value = heads[:, NUM_OUTPUTS:NUM_OUTPUTS + 1]
    h_n = state_out[:, :HIDDEN]
    c_n = state_out[:, HP:HP + HIDDEN]
    return logits, [h_n, c_n], value, state_out


# ---------------------------------------------------------------------------
# Parameter construction / packing
# ---------------------------------------------------------------------------
def init_params(key, input_size):
    """Logical params: (in, out) layout (== transpose of torch weights),
    LSTM gate order [i, f, g, o] along the last axis (PyTorch convention)."""
    ks = jax.random.split(key, 10)
    s = 0.1

    def mat(k, shape):
        return (s * jax.random.normal(k, shape)).astype(jnp.float32)

    return {
        "w1": mat(ks[0], (input_size, HIDDEN)),
        "b1": mat(ks[1], (1, HIDDEN)),
        "w2": mat(ks[2], (HIDDEN, HIDDEN)),
        "b2": mat(ks[3], (1, HIDDEN)),
        "w_ih": mat(ks[4], (HIDDEN, 4 * HIDDEN)),
        "b_ih": mat(ks[5], (1, 4 * HIDDEN)),
        "w_hh": mat(ks[6], (HIDDEN, 4 * HIDDEN)),
        "b_hh": mat(ks[7], (1, 4 * HIDDEN)),
        "w_out": mat(ks[8], (HIDDEN, NUM_OUTPUTS)),
        "b_out": jnp.zeros((1, NUM_OUTPUTS), jnp.float32),
        "w_v": mat(ks[9], (HIDDEN, 1)),
        "b_v": jnp.zeros((1, 1), jnp.float32),
    }


def pack_params(params):
    """Pack/pad logical params into 4 lane-aligned slabs (done once, host side)."""
    f32 = jnp.float32
    H = HIDDEN
    d_in = params["w1"].shape[0]

    # fc1: (Din, 128), cols 64:128 zero.
    w1p = jnp.zeros((d_in, HP), f32).at[:, :H].set(params["w1"])

    # fc2: (128,128), real block in [:64,:64]; heads: (128,128) = [w_out|w_v|0].
    w2p = jnp.zeros((HP, HP), f32).at[:H, :H].set(params["w2"])
    whp = (jnp.zeros((HP, HP), f32)
           .at[:H, :NUM_OUTPUTS].set(params["w_out"])
           .at[:H, NUM_OUTPUTS:NUM_OUTPUTS + 1].set(params["w_v"]))
    w2h = jnp.concatenate([w2p, whp], axis=1)            # (128, 256)

    # Stacked gate weights (256, 512): rows [0:64]=W_ih, [128:192]=W_hh,
    # gate k occupies lane block [k*128 : k*128+64]; everything else zero.
    wg = jnp.zeros((2 * HP, 4 * HP), f32)
    for k in range(4):
        wg = wg.at[:H, k * HP:k * HP + H].set(
            params["w_ih"][:, k * H:(k + 1) * H])
        wg = wg.at[HP:HP + H, k * HP:k * HP + H].set(
            params["w_hh"][:, k * H:(k + 1) * H])

    # One packed bias row: [b1 | b2 | (b_ih+b_hh) per 128-lane gate | b_heads].
    b1p = jnp.zeros((1, HP), f32).at[:, :H].set(params["b1"])
    b2p = jnp.zeros((1, HP), f32).at[:, :H].set(params["b2"])
    bsum = params["b_ih"] + params["b_hh"]
    bgp = jnp.zeros((1, 4 * HP), f32)
    for k in range(4):
        bgp = bgp.at[:, k * HP:k * HP + H].set(bsum[:, k * H:(k + 1) * H])
    bhp = (jnp.zeros((1, HP), f32)
           .at[:, :NUM_OUTPUTS].set(params["b_out"])
           .at[:, NUM_OUTPUTS:NUM_OUTPUTS + 1].set(params["b_v"]))
    bias = jnp.concatenate([b1p, b2p, bgp, bhp], axis=1)  # (1, 896)

    return {"w1p": w1p, "w2h": w2h, "wg": wg, "bias": bias}


def pack_state(h, c):
    """(B,64) h/c -> packed (B,256) slab [h | 0 | c | 0]."""
    B = h.shape[0]
    return (jnp.zeros((B, 2 * HP), jnp.float32)
            .at[:, :HIDDEN].set(h)
            .at[:, HP:HP + HIDDEN].set(c))


# ---------------------------------------------------------------------------
# Pure-JAX reference (matches the torch module's math)
# ---------------------------------------------------------------------------
def reference_forward(x, params, h0, c0):
    B = x.shape[0]
    if x.ndim > 2:
        x = x.reshape(B, -1)
    x = x.astype(jnp.float32)
    H = HIDDEN
    h1 = jnp.tanh(x @ params["w1"] + params["b1"])
    h2 = jnp.tanh(h1 @ params["w2"] + params["b2"])
    gates = (h2 @ params["w_ih"] + params["b_ih"]
             + h0 @ params["w_hh"] + params["b_hh"])
    i_g = jax.nn.sigmoid(gates[:, 0 * H:1 * H])
    f_g = jax.nn.sigmoid(gates[:, 1 * H:2 * H])
    g_g = jnp.tanh(gates[:, 2 * H:3 * H])
    o_g = jax.nn.sigmoid(gates[:, 3 * H:4 * H])
    c_new = f_g * c0 + i_g * g_g
    h_new = o_g * jnp.tanh(c_new)
    logits = h_new @ params["w_out"] + params["b_out"]
    value = h_new @ params["w_v"] + params["b_v"]
    return logits, h_new, c_new, value


# ---------------------------------------------------------------------------
if __name__ == "__main__":
    key = jax.random.PRNGKey(0)
    k_obs1, k_obs2, k_param = jax.random.split(key, 3)

    # obs_space shape (4, 4, 4) -> input_size = 64; batch = 8 (fills sublanes)
    B, C, Hs, Ws = 8, 4, 4, 4
    input_size = C * Hs * Ws
    x1 = jax.random.normal(k_obs1, (B, C, Hs, Ws), dtype=jnp.float32)
    x2 = jax.random.normal(k_obs2, (B, C, Hs, Ws), dtype=jnp.float32)

    params = init_params(k_param, input_size)
    packed = pack_params(params)

    # empty-state branch of the torch module: zero h/c
    state0 = jnp.zeros((B, 2 * HP), jnp.float32)

    fwd = jax.jit(custom_lstm_forward)

    # two recurrent steps, feeding the packed state slab back in
    logits1, (h1_n, c1_n), val1, state1 = fwd(x1, packed, state0)
    logits2, (h2_n, c2_n), val2, state2 = fwd(x2, packed, state1)
    jax.block_until_ready((logits1, val1, logits2, val2, state2))

    # correctness check against a pure-JAX reference for both steps
    rl1, rh1, rc1, rv1 = reference_forward(
        x1, params, jnp.zeros((B, HIDDEN), jnp.float32),
        jnp.zeros((B, HIDDEN), jnp.float32))
    rl2, rh2, rc2, rv2 = reference_forward(x2, params, rh1, rc1)

    assert jnp.allclose(logits1, rl1, atol=2e-4)
    assert jnp.allclose(h1_n, rh1, atol=2e-4)
    assert jnp.allclose(c1_n, rc1, atol=2e-4)
    assert jnp.allclose(val1, rv1, atol=2e-4)
    assert jnp.allclose(logits2, rl2, atol=2e-4)
    assert jnp.allclose(h2_n, rh2, atol=2e-4)
    assert jnp.allclose(c2_n, rc2, atol=2e-4)
    assert jnp.allclose(val2, rv2, atol=2e-4)
    # pad lanes of the recurrent state must stay exactly zero
    assert jnp.all(state2[:, HIDDEN:HP] == 0.0)
    assert jnp.all(state2[:, HP + HIDDEN:] == 0.0)

    print("KERNEL_OK")
</pallas_src>

<mosaic_0001>
module attributes {stable_mosaic.version = 11 : i64} {
  func.func @_forward_kernel(%arg0: memref<8x64xf32, #tpu.memory_space<vmem>>, %arg1: memref<8x256xf32, #tpu.memory_space<vmem>>, %arg2: memref<64x128xf32, #tpu.memory_space<vmem>>, %arg3: memref<128x256xf32, #tpu.memory_space<vmem>>, %arg4: memref<256x512xf32, #tpu.memory_space<vmem>>, %arg5: memref<1x896xf32, #tpu.memory_space<vmem>>, %arg6: memref<8x256xf32, #tpu.memory_space<vmem>>, %arg7: memref<8x128xf32, #tpu.memory_space<vmem>>) attributes {dimension_semantics = [], scalar_prefetch = 0 : i64, scratch_operands = 0 : i64, tpu.core_type = #tpu.core_type<tc>} {
    %c0 = arith.constant 0 : index
    %c0_0 = arith.constant 0 : index
    %0 = vector.load %arg5[%c0, %c0_0] : memref<1x896xf32, #tpu.memory_space<vmem>>, vector<1x128xf32>
    %c0_1 = arith.constant 0 : index
    %c128 = arith.constant 128 : index
    %1 = vector.load %arg5[%c0_1, %c128] : memref<1x896xf32, #tpu.memory_space<vmem>>, vector<1x128xf32>
    %c0_2 = arith.constant 0 : index
    %c256 = arith.constant 256 : index
    %2 = vector.load %arg5[%c0_2, %c256] : memref<1x896xf32, #tpu.memory_space<vmem>>, vector<1x512xf32>
    %c0_3 = arith.constant 0 : index
    %c768 = arith.constant 768 : index
    %3 = vector.load %arg5[%c0_3, %c768] : memref<1x896xf32, #tpu.memory_space<vmem>>, vector<1x128xf32>
    %c0_4 = arith.constant 0 : index
    %c0_5 = arith.constant 0 : index
    %4 = vector.load %arg0[%c0_4, %c0_5] : memref<8x64xf32, #tpu.memory_space<vmem>>, vector<8x64xf32>
    %c0_6 = arith.constant 0 : index
    %c0_7 = arith.constant 0 : index
    %5 = vector.load %arg2[%c0_6, %c0_7] : memref<64x128xf32, #tpu.memory_space<vmem>>, vector<64x128xf32>
    %cst = arith.constant dense<0.000000e+00> : vector<8x128xf32>
    %6 = tpu.matmul %4, %5, %cst {dimension_numbers = #tpu.dot_dimension_numbers<[1], [0], [0], [1], [0, 0, 1, 1], [], []>} : vector<8x64xf32>, vector<64x128xf32>, vector<8x128xf32> -> vector<8x128xf32>
    %7 = vector.broadcast %0 : vector<1x128xf32> to vector<8x128xf32>
    %8 = arith.addf %6, %7 : vector<8x128xf32>
    %9 = math.tanh %8 : vector<8x128xf32>
    %c0_8 = arith.constant 0 : index
    %c0_9 = arith.constant 0 : index
    %10 = vector.load %arg3[%c0_8, %c0_9] : memref<128x256xf32, #tpu.memory_space<vmem>>, vector<128x128xf32>
    %cst_10 = arith.constant dense<0.000000e+00> : vector<8x128xf32>
    %11 = tpu.matmul %9, %10, %cst_10 {dimension_numbers = #tpu.dot_dimension_numbers<[1], [0], [0], [1], [0, 0, 1, 1], [], []>} : vector<8x128xf32>, vector<128x128xf32>, vector<8x128xf32> -> vector<8x128xf32>
    %12 = vector.broadcast %1 : vector<1x128xf32> to vector<8x128xf32>
    %13 = arith.addf %11, %12 : vector<8x128xf32>
    %14 = math.tanh %13 : vector<8x128xf32>
    %c0_11 = arith.constant 0 : index
    %c0_12 = arith.constant 0 : index
    %15 = vector.load %arg1[%c0_11, %c0_12] : memref<8x256xf32, #tpu.memory_space<vmem>>, vector<8x128xf32>
    %c0_13 = arith.constant 0 : index
    %c128_14 = arith.constant 128 : index
    %16 = vector.load %arg1[%c0_13, %c128_14] : memref<8x256xf32, #tpu.memory_space<vmem>>, vector<8x128xf32>
    %17 = tpu.concatenate %14, %15 in 1 : vector<8x128xf32>, vector<8x128xf32> -> vector<8x256xf32>
    %c0_15 = arith.constant 0 : index
    %c0_16 = arith.constant 0 : index
    %18 = vector.load %arg4[%c0_15, %c0_16] : memref<256x512xf32, #tpu.memory_space<vmem>>, vector<256x512xf32>
    %cst_17 = arith.constant dense<0.000000e+00> : vector<8x512xf32>
    %19 = tpu.matmul %17, %18, %cst_17 {dimension_numbers = #tpu.dot_dimension_numbers<[1], [0], [0], [1], [0, 0, 1, 1], [], []>} : vector<8x256xf32>, vector<256x512xf32>, vector<8x512xf32> -> vector<8x512xf32>
    %20 = vector.broadcast %2 : vector<1x512xf32> to vector<8x512xf32>
    %21 = arith.addf %19, %20 : vector<8x512xf32>
    %22 = vector.extract_strided_slice %21 {offsets = [0, 0], sizes = [8, 128], strides = [1, 1]} : vector<8x512xf32> to vector<8x128xf32>
    %23 = arith.negf %22 : vector<8x128xf32>
    %24 = math.exp %23 : vector<8x128xf32>
    %cst_18 = arith.constant 1.000000e+00 : f32
    %25 = vector.broadcast %cst_18 : f32 to vector<8x128xf32>
    %26 = arith.addf %25, %24 : vector<8x128xf32>
    %27 = arith.divf %25, %26 : vector<8x128xf32>
    %28 = vector.extract_strided_slice %21 {offsets = [0, 128], sizes = [8, 128], strides = [1, 1]} : vector<8x512xf32> to vector<8x128xf32>
    %29 = arith.negf %28 : vector<8x128xf32>
    %30 = math.exp %29 : vector<8x128xf32>
    %cst_19 = arith.constant 1.000000e+00 : f32
    %31 = vector.broadcast %cst_19 : f32 to vector<8x128xf32>
    %32 = arith.addf %31, %30 : vector<8x128xf32>
    %33 = arith.divf %31, %32 : vector<8x128xf32>
    %34 = vector.extract_strided_slice %21 {offsets = [0, 256], sizes = [8, 128], strides = [1, 1]} : vector<8x512xf32> to vector<8x128xf32>
    %35 = math.tanh %34 : vector<8x128xf32>
    %36 = vector.extract_strided_slice %21 {offsets = [0, 384], sizes = [8, 128], strides = [1, 1]} : vector<8x512xf32> to vector<8x128xf32>
    %37 = arith.negf %36 : vector<8x128xf32>
    %38 = math.exp %37 : vector<8x128xf32>
    %cst_20 = arith.constant 1.000000e+00 : f32
    %39 = vector.broadcast %cst_20 : f32 to vector<8x128xf32>
    %40 = arith.addf %39, %38 : vector<8x128xf32>
    %41 = arith.divf %39, %40 : vector<8x128xf32>
    %42 = arith.mulf %33, %16 : vector<8x128xf32>
    %43 = arith.mulf %27, %35 : vector<8x128xf32>
    %44 = arith.addf %42, %43 : vector<8x128xf32>
    %45 = math.tanh %44 : vector<8x128xf32>
    %46 = arith.mulf %41, %45 : vector<8x128xf32>
    %c0_21 = arith.constant 0 : index
    %c0_22 = arith.constant 0 : index
    %47 = vector.load %arg6[%c0_21, %c0_22] : memref<8x256xf32, #tpu.memory_space<vmem>>, vector<8x128xf32>
    tpu.vector_store %arg6[%c0_21, %c0_22], %46 {strides = array<i32>} : memref<8x256xf32, #tpu.memory_space<vmem>>, vector<8x128xf32>,
    %c0_23 = arith.constant 0 : index
    %c128_24 = arith.constant 128 : index
    %48 = vector.load %arg6[%c0_23, %c128_24] : memref<8x256xf32, #tpu.memory_space<vmem>>, vector<8x128xf32>
    tpu.vector_store %arg6[%c0_23, %c128_24], %44 {strides = array<i32>} : memref<8x256xf32, #tpu.memory_space<vmem>>, vector<8x128xf32>,
    %c0_25 = arith.constant 0 : index
    %c128_26 = arith.constant 128 : index
    %49 = vector.load %arg3[%c0_25, %c128_26] : memref<128x256xf32, #tpu.memory_space<vmem>>, vector<128x128xf32>
    %cst_27 = arith.constant dense<0.000000e+00> : vector<8x128xf32>
    %50 = tpu.matmul %46, %49, %cst_27 {dimension_numbers = #tpu.dot_dimension_numbers<[1], [0], [0], [1], [0, 0, 1, 1], [], []>} : vector<8x128xf32>, vector<128x128xf32>, vector<8x128xf32> -> vector<8x128xf32>
    %51 = vector.broadcast %3 : vector<1x128xf32> to vector<8x128xf32>
    %52 = arith.addf %50, %51 : vector<8x128xf32>
    %c0_28 = arith.constant 0 : index
    %c0_29 = arith.constant 0 : index
    %53 = vector.load %arg7[%c0_28, %c0_29] : memref<8x128xf32, #tpu.memory_space<vmem>>, vector<8x128xf32>
    tpu.vector_store %arg7[%c0_28, %c0_29], %52 {strides = array<i32>} : memref<8x128xf32, #tpu.memory_space<vmem>>, vector<8x128xf32>,
    return
  }
}

</mosaic_0001>

<llo_original>
// kernel: custom_lstm_forward.1
$region0: #{custom_lstm_forward.1}
  #allocation0 [shape = 'u32[]', space=smem, size = 0x4, offset = 0x4, fixed_abs, tag = 'smem constant byte address 0x4 - core index']
  #allocation1 [shape = 'u32[144,128]{1,0:T(1,128)}', space=vmem, size = 0x12000, scoped, tag = 'internal scratch']
  %s0 = inlined_call_operand.vmem [shape: f32[8,64], index: 0, kind: input, shape index: {}]
  %s1 = inlined_call_operand.vmem [shape: f32[8,256], index: 1, kind: input, shape index: {}, may-alias: {1,6}]
  %s2 = inlined_call_operand.vmem [shape: f32[64,128], index: 2, kind: input, shape index: {}]
  %s3 = inlined_call_operand.hbm [shape: f32[128,256], index: 3, kind: input, shape index: {}]
  %s4 = inlined_call_operand.hbm [shape: f32[256,512], index: 4, kind: input, shape index: {}]
  %s5 = inlined_call_operand.vmem [shape: f32[1,896], index: 5, kind: input, shape index: {}]
  %s6 = inlined_call_operand.vmem [shape: f32[8,256], index: 6, kind: output, shape index: {0}, may-alias: {1,6}]
  %s7 = inlined_call_operand.vmem [shape: f32[8,128], index: 7, kind: output, shape index: {1}]
  %8 = xla_tuple %s6, %s7
  %s9 = sld [smem:[#allocation0]]
  $region50: #{custom_lstm_forward.1} parent=0
    _
  %s11 = ssub.s32 1, %s9
  %s12 = scalar_select 0, %s11, %s9
  $region1: #{custom_lstm_forward.1} parent=0
    #allocation2 [shape = 'u8[131072]{0}', space=vmem, size = 0x20000, scoped, tag = 'input window, operand 3, single buffered']
    #allocation3 [shape = 's32[1]{0}', space=sflag, size = 0x4, scoped, tag = 'scoped memory for custom_lstm_forward.1']
    #allocation4 [shape = 'u8[524288]{0}', space=vmem, size = 0x80000, scoped, tag = 'input window, operand 4, single buffered']
    #allocation5 [shape = 's32[1]{0}', space=sflag, size = 0x4, scoped, tag = 'scoped memory for custom_lstm_forward.1']
    %13 = vsyncpa [#allocation3], 0
    %14 = vsyncpa [#allocation5], 0
    // Predicated region
    $region2: #{custom_lstm_forward.1} parent=1 // pred_check
      _
    $region3: #{custom_lstm_forward.1} parent=1 // pred_check_branch
      %16 = sbr.rel (0) target = $region5
    $region4: #{custom_lstm_forward.1} parent=1 // pred_region
      _
    $region5: #{custom_lstm_forward.1} parent=1 // pred_fallthru
      _
    // Predicated region
    $region6: #{custom_lstm_forward.1} parent=1 // pred_check
      _
    $region7: #{custom_lstm_forward.1} parent=1 // pred_check_branch
      %18 = sbr.rel (0) target = $region9
    $region8: #{custom_lstm_forward.1} parent=1 // pred_region
      _
    $region9: #{custom_lstm_forward.1} parent=1 // pred_fallthru
      _
    // Predicated region
    $region10: #{custom_lstm_forward.1} parent=1 // pred_check
      _
    $region11: #{custom_lstm_forward.1} parent=1 // pred_check_branch
      %20 = sbr.rel (0) target = $region13
    $region12: #{custom_lstm_forward.1} parent=1 // pred_region
      _
    $region13: #{custom_lstm_forward.1} parent=1 // pred_fallthru
      _
    // Predicated region
    $region14: #{custom_lstm_forward.1} parent=1 // pred_check
      _
    $region15: #{custom_lstm_forward.1} parent=1 // pred_check_branch
      %22 = sbr.rel (0) target = $region17
    $region16: #{custom_lstm_forward.1} parent=1 // pred_region
      %s24 = ssub.s32 4096, 4096
      %25 = vsyncadd [#allocation3], %s24
      %s26 = sshll.u32 [#allocation2], 4
      %s27 = int_to_ptr.vmem [resolvable:$true] %s26
      %32 = dma.hbm_to_vmem [thread:$0]  %s3, 4096, %s27, [#allocation3], 256, 256, 16
    $region17: #{custom_lstm_forward.1} parent=1 // pred_fallthru
      _
    // Predicated region
    $region18: #{custom_lstm_forward.1} parent=1 // pred_check
      _
    $region19: #{custom_lstm_forward.1} parent=1 // pred_check_branch
      %34 = sbr.rel (0) target = $region21
    $region20: #{custom_lstm_forward.1} parent=1 // pred_region
      %s36 = ssub.s32 16384, 16384
      %37 = vsyncadd [#allocation5], %s36
      %s38 = sshll.u32 [#allocation4], 4
      %s39 = int_to_ptr.vmem [resolvable:$true] %s38
      %44 = dma.hbm_to_vmem [thread:$0]  %s4, 16384, %s39, [#allocation5], 512, 512, 32
    $region21: #{custom_lstm_forward.1} parent=1 // pred_fallthru
      _
    // Predicated region
    $region22: #{custom_lstm_forward.1} parent=1 // pred_check
      _
    $region23: #{custom_lstm_forward.1} parent=1 // pred_check_branch
      %46 = sbr.rel (0) target = $region25
    $region24: #{custom_lstm_forward.1} parent=1 // pred_region
      _
    $region25: #{custom_lstm_forward.1} parent=1 // pred_fallthru
      _
    // Predicated region
    $region26: #{custom_lstm_forward.1} parent=1 // pred_check
      _
    $region27: #{custom_lstm_forward.1} parent=1 // pred_check_branch
      %48 = sbr.rel (0) target = $region29
    $region28: #{custom_lstm_forward.1} parent=1 // pred_region
      %49 = dma.done [#allocation3], 4096
    $region29: #{custom_lstm_forward.1} parent=1 // pred_fallthru
      _
    // Predicated region
    $region30: #{custom_lstm_forward.1} parent=1 // pred_check
      _
    $region31: #{custom_lstm_forward.1} parent=1 // pred_check_branch
      %51 = sbr.rel (0) target = $region33
    $region32: #{custom_lstm_forward.1} parent=1 // pred_region
      %52 = dma.done [#allocation5], 16384
    $region33: #{custom_lstm_forward.1} parent=1 // pred_fallthru
      _
    %v53 = vld [vmem:[%s5] sm:$0x1]
    %v54 = vld [vmem:[%s5 + $0x1] sm:$0x1]
    %v55 = vld [vmem:[%s5 + $0x2] sm:$0xf]
    %v56 = vld [vmem:[%s5 + $0x6] sm:$0x1]
    %v57 = vld [vmem:[%s0] sm:$0xff]
    %v58 = vld [vmem:[%s2] sm:$0xff]
    %v59 = vld [vmem:[%s2 + $0x8] sm:$0xff]
    %v60 = vld [vmem:[%s2 + $0x10] sm:$0xff]
    %v61 = vld [vmem:[%s2 + $0x18] sm:$0xff]
    %v62 = vld [vmem:[%s2 + $0x20] sm:$0xff]
    %v63 = vld [vmem:[%s2 + $0x28] sm:$0xff]
    %v64 = vld [vmem:[%s2 + $0x30] sm:$0xff]
    %v65 = vld [vmem:[%s2 + $0x38] sm:$0xff]
    %v67 = vlaneseq
    %v68 = vshrl.u32 %v67, 7
    %v69 = vsub.s32 0, %v68
    %v70 = vrot.slane %v53, %v69
    %vm72 = vcmask 523264
    %v74 = vsel %vm72, %v57, 0
    %76 = vmatprep.subr.mxu0 0.0
    %77 = vmatpush1.msra.mxu0 %v58
    %78 = vmatprep.subr.mxu0 0.0
    %79 = vmatpush1.msra.mxu0 %v59
    %80 = vmatprep.subr.mxu0 0.0
    %81 = vmatpush1.msra.mxu0 %v60
    %82 = vmatprep.subr.mxu0 0.0
    %83 = vmatpush1.msra.mxu0 %v61
    %84 = vmatprep.subr.mxu0 0.0
    %85 = vmatpush1.msra.mxu0 %v62
    %86 = vmatprep.subr.mxu0 0.0
    %87 = vmatpush1.msra.mxu0 %v63
    %88 = vmatprep.subr.mxu0 0.0
    %89 = vmatpush1.msra.mxu0 %v64
    %90 = vmatprep.subr.mxu0 0.0
    %91 = vmatpush1.msra.mxu0 %v65
    %92 = vmatprep.subr.mxu0 0.0
    %93 = vmatpush1.msra.mxu0 0.0
    %94 = vmatprep.subr.mxu0 0.0
    %95 = vmatpush1.msra.mxu0 0.0
    %96 = vmatprep.subr.mxu0 0.0
    %97 = vmatpush1.msra.mxu0 0.0
    %98 = vmatprep.subr.mxu0 0.0
    %99 = vmatpush1.msra.mxu0 0.0
    %100 = vmatprep.subr.mxu0 0.0
    %101 = vmatpush1.msra.mxu0 0.0
    %102 = vmatprep.subr.mxu0 0.0
    %103 = vmatpush1.msra.mxu0 0.0
    %104 = vmatprep.subr.mxu0 0.0
    %105 = vmatpush1.msra.mxu0 0.0
    %106 = vmatprep.subr.mxu0 0.0
    %107 = vmatpush1.msra.mxu0 0.0
    %108 = vmatprep.subr.mxu0 0.0
    %109 = vmatpush1.msra.mxu0 0.0
    %110 = vmatprep.subr.mxu0 0.0
    %111 = vmatpush1.msra.mxu0 0.0
    %112 = vmatprep.subr.mxu0 0.0
    %113 = vmatpush1.msra.mxu0 0.0
    %114 = vmatprep.subr.mxu0 0.0
    %115 = vmatpush1.msra.mxu0 0.0
    %116 = vmatprep.subr.mxu0 0.0
    %117 = vmatpush1.msra.mxu0 0.0
    %118 = vmatprep.subr.mxu0 0.0
    %119 = vmatpush1.msra.mxu0 0.0
    %120 = vmatprep.subr.mxu0 0.0
    %121 = vmatpush1.msra.mxu0 0.0
    %122 = vmatprep.subr.mxu0 0.0
    %123 = vmatpush1.msra.mxu0 0.0
    %124 = vmatprep.subr.mxu0 0.0
    %125 = vmatpush1.msra.mxu0 0.0
    %126 = vmatprep.subr.mxu0 0.0
    %127 = vmatpush1.msra.mxu0 0.0
    %128 = vmatprep.subr.mxu0 0.0
    %129 = vmatpush1.msra.mxu0 0.0
    %130 = vmatprep.subr.mxu0 0.0
    %131 = vmatpush1.msra.mxu0 0.0
    %132 = vmatprep.subr.mxu0 0.0
    %133 = vmatpush1.msra.mxu0 0.0
    %134 = vmatprep.subr.mxu0 0.0
    %135 = vmatpush1.msra.mxu0 0.0
    %136 = vmatprep.subr.mxu0 0.0
    %137 = vmatpush1.msra.mxu0 0.0
    %138 = vmatprep.subr.mxu0 0.0
    %139 = vmatpush1.msra.mxu0 0.0
    %140 = vmatprep.mubr.f32.mxu0 0.0
    %141 = vmatmul.mubr.f32.gmra.mrb[0].mxu0 %v74
    %v142 = vpop.f32.mrb[0].mxu0
    %v143 = vadd.f32 %v70, %v142
    %v144 = vpop.f32.mrb[0].mxu0
    %145 = vdwg.mxu0
    %v146 = vtanh.pop %v143
    %v147 = vld [vmem:[#allocation2] sm:$0xff]
    %v148 = vld [vmem:[#allocation2 + $0x10] sm:$0xff]
    %v149 = vld [vmem:[#allocation2 + $0x20] sm:$0xff]
    %v150 = vld [vmem:[#allocation2 + $0x30] sm:$0xff]
    %v151 = vld [vmem:[#allocation2 + $0x40] sm:$0xff]
    %v152 = vld [vmem:[#allocation2 + $0x50] sm:$0xff]
    %v153 = vld [vmem:[#allocation2 + $0x60] sm:$0xff]
    %v154 = vld [vmem:[#allocation2 + $0x70] sm:$0xff]
    %v155 = vld [vmem:[#allocation2 + $0x80] sm:$0xff]
    %v156 = vld [vmem:[#allocation2 + $0x90] sm:$0xff]
    %v157 = vld [vmem:[#allocation2 + $0xa0] sm:$0xff]
    %v158 = vld [vmem:[#allocation2 + $0xb0] sm:$0xff]
    %v159 = vld [vmem:[#allocation2 + $0xc0] sm:$0xff]
    %v160 = vld [vmem:[#allocation2 + $0xd0] sm:$0xff]
    %v161 = vld [vmem:[#allocation2 + $0xe0] sm:$0xff]
    %v162 = vld [vmem:[#allocation2 + $0xf0] sm:$0xff]
    %v164 = vlaneseq
    %v165 = vshrl.u32 %v164, 7
    %v166 = vsub.s32 0, %v165
    %v167 = vrot.slane %v54, %v166
    %169 = vmatprep.subr.mxu0 0.0
    %170 = vmatpush1.msra.mxu0 %v147
    %171 = vmatprep.subr.mxu0 0.0
    %172 = vmatpush1.msra.mxu0 %v148
    %173 = vmatprep.subr.mxu0 0.0
    %174 = vmatpush1.msra.mxu0 %v149
    %175 = vmatprep.subr.mxu0 0.0
    %176 = vmatpush1.msra.mxu0 %v150
    %177 = vmatprep.subr.mxu0 0.0
    %178 = vmatpush1.msra.mxu0 %v151
    %179 = vmatprep.subr.mxu0 0.0
    %180 = vmatpush1.msra.mxu0 %v152
    %181 = vmatprep.subr.mxu0 0.0
    %182 = vmatpush1.msra.mxu0 %v153
    %183 = vmatprep.subr.mxu0 0.0
    %184 = vmatpush1.msra.mxu0 %v154
    %185 = vmatprep.subr.mxu0 0.0
    %186 = vmatpush1.msra.mxu0 %v155
    %187 = vmatprep.subr.mxu0 0.0
    %188 = vmatpush1.msra.mxu0 %v156
    %189 = vmatprep.subr.mxu0 0.0
    %190 = vmatpush1.msra.mxu0 %v157
    %191 = vmatprep.subr.mxu0 0.0
    %192 = vmatpush1.msra.mxu0 %v158
    %193 = vmatprep.subr.mxu0 0.0
    %194 = vmatpush1.msra.mxu0 %v159
    %195 = vmatprep.subr.mxu0 0.0
    %196 = vmatpush1.msra.mxu0 %v160
    %197 = vmatprep.subr.mxu0 0.0
    %198 = vmatpush1.msra.mxu0 %v161
    %199 = vmatprep.subr.mxu0 0.0
    %200 = vmatpush1.msra.mxu0 %v162
    %201 = vmatprep.subr.mxu0 0.0
    %202 = vmatpush1.msra.mxu0 0.0
    %203 = vmatprep.subr.mxu0 0.0
    %204 = vmatpush1.msra.mxu0 0.0
    %205 = vmatprep.subr.mxu0 0.0
    %206 = vmatpush1.msra.mxu0 0.0
    %207 = vmatprep.subr.mxu0 0.0
    %208 = vmatpush1.msra.mxu0 0.0
    %209 = vmatprep.subr.mxu0 0.0
    %210 = vmatpush1.msra.mxu0 0.0
    %211 = vmatprep.subr.mxu0 0.0
    %212 = vmatpush1.msra.mxu0 0.0
    %213 = vmatprep.subr.mxu0 0.0
    %214 = vmatpush1.msra.mxu0 0.0
    %215 = vmatprep.subr.mxu0 0.0
    %216 = vmatpush1.msra.mxu0 0.0
    %217 = vmatprep.subr.mxu0 0.0
    %218 = vmatpush1.msra.mxu0 0.0
    %219 = vmatprep.subr.mxu0 0.0
    %220 = vmatpush1.msra.mxu0 0.0
    %221 = vmatprep.subr.mxu0 0.0
    %222 = vmatpush1.msra.mxu0 0.0
    %223 = vmatprep.subr.mxu0 0.0
    %224 = vmatpush1.msra.mxu0 0.0
    %225 = vmatprep.subr.mxu0 0.0
    %226 = vmatpush1.msra.mxu0 0.0
    %227 = vmatprep.subr.mxu0 0.0
    %228 = vmatpush1.msra.mxu0 0.0
    %229 = vmatprep.subr.mxu0 0.0
    %230 = vmatpush1.msra.mxu0 0.0
    %231 = vmatprep.subr.mxu0 0.0
    %232 = vmatpush1.msra.mxu0 0.0
    %233 = vmatprep.mubr.f32.mxu0 0.0
    %234 = vmatmul.mubr.f32.gmra.mrb[0].mxu0 %v146
    %v235 = vpop.f32.mrb[0].mxu0
    %v236 = vadd.f32 %v167, %v235
    %v237 = vpop.f32.mrb[0].mxu0
    %238 = vdwg.mxu0
    %v239 = vtanh.pop %v236
    %v240 = vld [vmem:[%s1] sm:$0xff]
    %v241 = vld [vmem:[%s1 + $0x8] sm:$0xff]
    %v242 = vld [vmem:[#allocation4] sm:$0xff]
    %v243 = vld [vmem:[#allocation4 + $0x8] sm:$0xff]
    %v244 = vld [vmem:[#allocation4 + $0x10] sm:$0xff]
    %v245 = vld [vmem:[#allocation4 + $0x18] sm:$0xff]
    %v246 = vld [vmem:[#allocation4 + $0x20] sm:$0xff]
    %v247 = vld [vmem:[#allocation4 + $0x28] sm:$0xff]
    %v248 = vld [vmem:[#allocation4 + $0x30] sm:$0xff]
    %v249 = vld [vmem:[#allocation4 + $0x38] sm:$0xff]
    %v250 = vld [vmem:[#allocation4 + $0x40] sm:$0xff]
    %v251 = vld [vmem:[#allocation4 + $0x48] sm:$0xff]
    %v252 = vld [vmem:[#allocation4 + $0x50] sm:$0xff]
    %v253 = vld [vmem:[#allocation4 + $0x58] sm:$0xff]
    %v254 = vld [vmem:[#allocation4 + $0x60] sm:$0xff]
    %v255 = vld [vmem:[#allocation4 + $0x68] sm:$0xff]
    %v256 = vld [vmem:[#allocation4 + $0x70] sm:$0xff]
    %v257 = vld [vmem:[#allocation4 + $0x78] sm:$0xff]
    %v258 = vld [vmem:[#allocation4 + $0x80] sm:$0xff]
    %v259 = vld [vmem:[#allocation4 + $0x88] sm:$0xff]
    %v260 = vld [vmem:[#allocation4 + $0x90] sm:$0xff]
    %v261 = vld [vmem:[#allocation4 + $0x98] sm:$0xff]
    %v262 = vld [vmem:[#allocation4 + $0xa0] sm:$0xff]
    %v263 = vld [vmem:[#allocation4 + $0xa8] sm:$0xff]
    %v264 = vld [vmem:[#allocation4 + $0xb0] sm:$0xff]
    %v265 = vld [vmem:[#allocation4 + $0xb8] sm:$0xff]
    %v266 = vld [vmem:[#allocation4 + $0xc0] sm:$0xff]
    %v267 = vld [vmem:[#allocation4 + $0xc8] sm:$0xff]
    %v268 = vld [vmem:[#allocation4 + $0xd0] sm:$0xff]
    %v269 = vld [vmem:[#allocation4 + $0xd8] sm:$0xff]
    %v270 = vld [vmem:[#allocation4 + $0xe0] sm:$0xff]
    %v271 = vld [vmem:[#allocation4 + $0xe8] sm:$0xff]
    %v272 = vld [vmem:[#allocation4 + $0xf0] sm:$0xff]
    %v273 = vld [vmem:[#allocation4 + $0xf8] sm:$0xff]
    %v274 = vld [vmem:[#allocation4 + $0x100] sm:$0xff]
    %v275 = vld [vmem:[#allocation4 + $0x108] sm:$0xff]
    %v276 = vld [vmem:[#allocation4 + $0x110] sm:$0xff]
    %v277 = vld [vmem:[#allocation4 + $0x118] sm:$0xff]
    %v278 = vld [vmem:[#allocation4 + $0x120] sm:$0xff]
    %v279 = vld [vmem:[#allocation4 + $0x128] sm:$0xff]
    %v280 = vld [vmem:[#allocation4 + $0x130] sm:$0xff]
    %v281 = vld [vmem:[#allocation4 + $0x138] sm:$0xff]
    %v282 = vld [vmem:[#allocation4 + $0x140] sm:$0xff]
    %v283 = vld [vmem:[#allocation4 + $0x148] sm:$0xff]
    %v284 = vld [vmem:[#allocation4 + $0x150] sm:$0xff]
    %v285 = vld [vmem:[#allocation4 + $0x158] sm:$0xff]
    %v286 = vld [vmem:[#allocation4 + $0x160] sm:$0xff]
    %v287 = vld [vmem:[#allocation4 + $0x168] sm:$0xff]
    %v288 = vld [vmem:[#allocation4 + $0x170] sm:$0xff]
    %v289 = vld [vmem:[#allocation4 + $0x178] sm:$0xff]
    %v290 = vld [vmem:[#allocation4 + $0x180] sm:$0xff]
    %v291 = vld [vmem:[#allocation4 + $0x188] sm:$0xff]
    %v292 = vld [vmem:[#allocation4 + $0x190] sm:$0xff]
    %v293 = vld [vmem:[#allocation4 + $0x198] sm:$0xff]
    %v294 = vld [vmem:[#allocation4 + $0x1a0] sm:$0xff]
    %v295 = vld [vmem:[#allocation4 + $0x1a8] sm:$0xff]
    %v296 = vld [vmem:[#allocation4 + $0x1b0] sm:$0xff]
    %v297 = vld [vmem:[#allocation4 + $0x1b8] sm:$0xff]
    %v298 = vld [vmem:[#allocation4 + $0x1c0] sm:$0xff]
    %v299 = vld [vmem:[#allocation4 + $0x1c8] sm:$0xff]
    %v300 = vld [vmem:[#allocation4 + $0x1d0] sm:$0xff]
    %v301 = vld [vmem:[#allocation4 + $0x1d8] sm:$0xff]
    %v302 = vld [vmem:[#allocation4 + $0x1e0] sm:$0xff]
    %v303 = vld [vmem:[#allocation4 + $0x1e8] sm:$0xff]
    %v304 = vld [vmem:[#allocation4 + $0x1f0] sm:$0xff]
    %v305 = vld [vmem:[#allocation4 + $0x1f8] sm:$0xff]
    %v306 = vld [vmem:[#allocation4 + $0x200] sm:$0xff]
    %v307 = vld [vmem:[#allocation4 + $0x208] sm:$0xff]
    %v308 = vld [vmem:[#allocation4 + $0x210] sm:$0xff]
    %v309 = vld [vmem:[#allocation4 + $0x218] sm:$0xff]
    %v310 = vld [vmem:[#allocation4 + $0x220] sm:$0xff]
    %v311 = vld [vmem:[#allocation4 + $0x228] sm:$0xff]
    %v312 = vld [vmem:[#allocation4 + $0x230] sm:$0xff]
    %v313 = vld [vmem:[#allocation4 + $0x238] sm:$0xff]
    %v314 = vld [vmem:[#allocation4 + $0x240] sm:$0xff]
    %v315 = vld [vmem:[#allocation4 + $0x248] sm:$0xff]
    %v316 = vld [vmem:[#allocation4 + $0x250] sm:$0xff]
    %v317 = vld [vmem:[#allocation4 + $0x258] sm:$0xff]
    %v318 = vld [vmem:[#allocation4 + $0x260] sm:$0xff]
    %v319 = vld [vmem:[#allocation4 + $0x268] sm:$0xff]
    %v320 = vld [vmem:[#allocation4 + $0x270] sm:$0xff]
    %v321 = vld [vmem:[#allocation4 + $0x278] sm:$0xff]
    %v322 = vld [vmem:[#allocation4 + $0x280] sm:$0xff]
    %v323 = vld [vmem:[#allocation4 + $0x288] sm:$0xff]
    %v324 = vld [vmem:[#allocation4 + $0x290] sm:$0xff]
    %v325 = vld [vmem:[#allocation4 + $0x298] sm:$0xff]
    %v326 = vld [vmem:[#allocation4 + $0x2a0] sm:$0xff]
    %v327 = vld [vmem:[#allocation4 + $0x2a8] sm:$0xff]
    %v328 = vld [vmem:[#allocation4 + $0x2b0] sm:$0xff]
    %v329 = vld [vmem:[#allocation4 + $0x2b8] sm:$0xff]
    %v330 = vld [vmem:[#allocation4 + $0x2c0] sm:$0xff]
    %v331 = vld [vmem:[#allocation4 + $0x2c8] sm:$0xff]
    %v332 = vld [vmem:[#allocation4 + $0x2d0] sm:$0xff]
    %v333 = vld [vmem:[#allocation4 + $0x2d8] sm:$0xff]
    %v334 = vld [vmem:[#allocation4 + $0x2e0] sm:$0xff]
    %v335 = vld [vmem:[#allocation4 + $0x2e8] sm:$0xff]
    %v336 = vld [vmem:[#allocation4 + $0x2f0] sm:$0xff]
    %v337 = vld [vmem:[#allocation4 + $0x2f8] sm:$0xff]
    %v338 = vld [vmem:[#allocation4 + $0x300] sm:$0xff]
    %v339 = vld [vmem:[#allocation4 + $0x308] sm:$0xff]
    %v340 = vld [vmem:[#allocation4 + $0x310] sm:$0xff]
    %v341 = vld [vmem:[#allocation4 + $0x318] sm:$0xff]
    %v342 = vld [vmem:[#allocation4 + $0x320] sm:$0xff]
    %v343 = vld [vmem:[#allocation4 + $0x328] sm:$0xff]
    %v344 = vld [vmem:[#allocation4 + $0x330] sm:$0xff]
    %v345 = vld [vmem:[#allocation4 + $0x338] sm:$0xff]
    %v346 = vld [vmem:[#allocation4 + $0x340] sm:$0xff]
    %v347 = vld [vmem:[#allocation4 + $0x348] sm:$0xff]
    %v348 = vld [vmem:[#allocation4 + $0x350] sm:$0xff]
    %v349 = vld [vmem:[#allocation4 + $0x358] sm:$0xff]
    %v350 = vld [vmem:[#allocation4 + $0x360] sm:$0xff]
    %v351 = vld [vmem:[#allocation4 + $0x368] sm:$0xff]
    %v352 = vld [vmem:[#allocation4 + $0x370] sm:$0xff]
    %v353 = vld [vmem:[#allocation4 + $0x378] sm:$0xff]
    %v354 = vld [vmem:[#allocation4 + $0x380] sm:$0xff]
    %v355 = vld [vmem:[#allocation4 + $0x388] sm:$0xff]
    %v356 = vld [vmem:[#allocation4 + $0x390] sm:$0xff]
    %v357 = vld [vmem:[#allocation4 + $0x398] sm:$0xff]
    %v358 = vld [vmem:[#allocation4 + $0x3a0] sm:$0xff]
    %v359 = vld [vmem:[#allocation4 + $0x3a8] sm:$0xff]
    %v360 = vld [vmem:[#allocation4 + $0x3b0] sm:$0xff]
    %v361 = vld [vmem:[#allocation4 + $0x3b8] sm:$0xff]
    %v362 = vld [vmem:[#allocation4 + $0x3c0] sm:$0xff]
    %v363 = vld [vmem:[#allocation4 + $0x3c8] sm:$0xff]
    %v364 = vld [vmem:[#allocation4 + $0x3d0] sm:$0xff]
    %v365 = vld [vmem:[#allocation4 + $0x3d8] sm:$0xff]
    %v366 = vld [vmem:[#allocation4 + $0x3e0] sm:$0xff]
    %v367 = vld [vmem:[#allocation4 + $0x3e8] sm:$0xff]
    %v368 = vld [vmem:[#allocation4 + $0x3f0] sm:$0xff]
    %v369 = vld [vmem:[#allocation4 + $0x3f8] sm:$0xff]
    %v371 = vlaneseq
    %v372 = vshrl.u32 %v371, 7
    %v373 = vsub.s32 0, %v372
    %v374 = vrot.slane %v55, %v373
    %v375 = vlaneseq
    %v376 = vshrl.u32 %v375, 7
    %v377 = vsub.s32 1, %v376
    %v378 = vrot.slane %v55, %v377
    %v379 = vlaneseq
    %v380 = vshrl.u32 %v379, 7
    %v381 = vsub.s32 2, %v380
    %v382 = vrot.slane %v55, %v381
    %v383 = vlaneseq
    %v384 = vshrl.u32 %v383, 7
    %v385 = vsub.s32 3, %v384
    %v386 = vrot.slane %v55, %v385
    %391 = vmatprep.subr.mxu0 %v243
    %392 = vmatpush1.msra.mxu0 %v242
    %393 = vmatprep.subr.mxu0 %v247
    %394 = vmatpush1.msra.mxu0 %v246
    %395 = vmatprep.subr.mxu0 %v251
    %396 = vmatpush1.msra.mxu0 %v250
    %397 = vmatprep.subr.mxu0 %v255
    %398 = vmatpush1.msra.mxu0 %v254
    %399 = vmatprep.subr.mxu0 %v259
    %400 = vmatpush1.msra.mxu0 %v258
    %401 = vmatprep.subr.mxu0 %v263
    %402 = vmatpush1.msra.mxu0 %v262
    %403 = vmatprep.subr.mxu0 %v267
    %404 = vmatpush1.msra.mxu0 %v266
    %405 = vmatprep.subr.mxu0 %v271
    %406 = vmatpush1.msra.mxu0 %v270
    %407 = vmatprep.subr.mxu0 %v275
    %408 = vmatpush1.msra.mxu0 %v274
    %409 = vmatprep.subr.mxu0 %v279
    %410 = vmatpush1.msra.mxu0 %v278
    %411 = vmatprep.subr.mxu0 %v283
    %412 = vmatpush1.msra.mxu0 %v282
    %413 = vmatprep.subr.mxu0 %v287
    %414 = vmatpush1.msra.mxu0 %v286
    %415 = vmatprep.subr.mxu0 %v291
    %416 = vmatpush1.msra.mxu0 %v290
    %417 = vmatprep.subr.mxu0 %v295
    %418 = vmatpush1.msra.mxu0 %v294
    %419 = vmatprep.subr.mxu0 %v299
    %420 = vmatpush1.msra.mxu0 %v298
    %421 = vmatprep.subr.mxu0 %v303
    %422 = vmatpush1.msra.mxu0 %v302
    %423 = vmatprep.subr.mxu0 %v307
    %424 = vmatpush1.msra.mxu0 %v306
    %425 = vmatprep.subr.mxu0 %v311
    %426 = vmatpush1.msra.mxu0 %v310
    %427 = vmatprep.subr.mxu0 %v315
    %428 = vmatpush1.msra.mxu0 %v314
    %429 = vmatprep.subr.mxu0 %v319
    %430 = vmatpush1.msra.mxu0 %v318
    %431 = vmatprep.subr.mxu0 %v323
    %432 = vmatpush1.msra.mxu0 %v322
    %433 = vmatprep.subr.mxu0 %v327
    %434 = vmatpush1.msra.mxu0 %v326
    %435 = vmatprep.subr.mxu0 %v331
    %436 = vmatpush1.msra.mxu0 %v330
    %437 = vmatprep.subr.mxu0 %v335
    %438 = vmatpush1.msra.mxu0 %v334
    %439 = vmatprep.subr.mxu0 %v339
    %440 = vmatpush1.msra.mxu0 %v338
    %441 = vmatprep.subr.mxu0 %v343
    %442 = vmatpush1.msra.mxu0 %v342
    %443 = vmatprep.subr.mxu0 %v347
    %444 = vmatpush1.msra.mxu0 %v346
    %445 = vmatprep.subr.mxu0 %v351
    %446 = vmatpush1.msra.mxu0 %v350
    %447 = vmatprep.subr.mxu0 %v355
    %448 = vmatpush1.msra.mxu0 %v354
    %449 = vmatprep.subr.mxu0 %v359
    %450 = vmatpush1.msra.mxu0 %v358
    %451 = vmatprep.subr.mxu0 %v363
    %452 = vmatpush1.msra.mxu0 %v362
    %453 = vmatprep.subr.mxu0 %v367
    %454 = vmatpush1.msra.mxu0 %v366
    %455 = vmatprep.mubr.f32.mxu0 %v240
    %456 = vmatmul.mubr.f32.gmra.mrb[0].mxu0 %v239
    %v457 = vpop.f32.mrb[0].mxu0
    %v458 = vadd.f32 %v374, %v457
    %v459 = vpop.f32.mrb[0].mxu0
    %v460 = vadd.f32 %v378, %v459
    %461 = vdwg.mxu0
    %462 = vmatprep.subr.mxu0 %v245
    %463 = vmatpush1.msra.mxu0 %v244
    %464 = vmatprep.subr.mxu0 %v249
    %465 = vmatpush1.msra.mxu0 %v248
    %466 = vmatprep.subr.mxu0 %v253
    %467 = vmatpush1.msra.mxu0 %v252
    %468 = vmatprep.subr.mxu0 %v257
    %469 = vmatpush1.msra.mxu0 %v256
    %470 = vmatprep.subr.mxu0 %v261
    %471 = vmatpush1.msra.mxu0 %v260
    %472 = vmatprep.subr.mxu0 %v265
    %473 = vmatpush1.msra.mxu0 %v264
    %474 = vmatprep.subr.mxu0 %v269
    %475 = vmatpush1.msra.mxu0 %v268
    %476 = vmatprep.subr.mxu0 %v273
    %477 = vmatpush1.msra.mxu0 %v272
    %478 = vmatprep.subr.mxu0 %v277
    %479 = vmatpush1.msra.mxu0 %v276
    %480 = vmatprep.subr.mxu0 %v281
    %481 = vmatpush1.msra.mxu0 %v280
    %482 = vmatprep.subr.mxu0 %v285
    %483 = vmatpush1.msra.mxu0 %v284
    %484 = vmatprep.subr.mxu0 %v289
    %485 = vmatpush1.msra.mxu0 %v288
    %486 = vmatprep.subr.mxu0 %v293
    %487 = vmatpush1.msra.mxu0 %v292
    %488 = vmatprep.subr.mxu0 %v297
    %489 = vmatpush1.msra.mxu0 %v296
    %490 = vmatprep.subr.mxu0 %v301
    %491 = vmatpush1.msra.mxu0 %v300
    %492 = vmatprep.subr.mxu0 %v305
    %493 = vmatpush1.msra.mxu0 %v304
    %494 = vmatprep.subr.mxu0 %v309
    %495 = vmatpush1.msra.mxu0 %v308
    %496 = vmatprep.subr.mxu0 %v313
    %497 = vmatpush1.msra.mxu0 %v312
    %498 = vmatprep.subr.mxu0 %v317
    %499 = vmatpush1.msra.mxu0 %v316
    %500 = vmatprep.subr.mxu0 %v321
    %501 = vmatpush1.msra.mxu0 %v320
    %502 = vmatprep.subr.mxu0 %v325
    %503 = vmatpush1.msra.mxu0 %v324
    %504 = vmatprep.subr.mxu0 %v329
    %505 = vmatpush1.msra.mxu0 %v328
    %506 = vmatprep.subr.mxu0 %v333
    %507 = vmatpush1.msra.mxu0 %v332
    %508 = vmatprep.subr.mxu0 %v337
    %509 = vmatpush1.msra.mxu0 %v336
    %510 = vmatprep.subr.mxu0 %v341
    %511 = vmatpush1.msra.mxu0 %v340
    %512 = vmatprep.subr.mxu0 %v345
    %513 = vmatpush1.msra.mxu0 %v344
    %514 = vmatprep.subr.mxu0 %v349
    %515 = vmatpush1.msra.mxu0 %v348
    %516 = vmatprep.subr.mxu0 %v353
    %517 = vmatpush1.msra.mxu0 %v352
    %518 = vmatprep.subr.mxu0 %v357
    %519 = vmatpush1.msra.mxu0 %v356
    %520 = vmatprep.subr.mxu0 %v361
    %521 = vmatpush1.msra.mxu0 %v360
    %522 = vmatprep.subr.mxu0 %v365
    %523 = vmatpush1.msra.mxu0 %v364
    %524 = vmatprep.subr.mxu0 %v369
    %525 = vmatpush1.msra.mxu0 %v368
    %526 = vmatprep.mubr.f32.mxu0 %v240
    %527 = vmatmul.mubr.f32.gmra.mrb[0].mxu0 %v239
    %v528 = vpop.f32.mrb[0].mxu0
    %v529 = vadd.f32 %v382, %v528
    %v530 = vpop.f32.mrb[0].mxu0
    %v531 = vadd.f32 %v386, %v530
    %532 = vdwg.mxu0
    %v533 = vxor.u32 %v458, 2147483648
    %v534 = vmul.f32 %v533, 1.442695
    %v535 = vpow.pop %v534
    %v536 = vadd.f32 %v535, 1.0
    %v537 = vrcp.pop %v536
    %v538 = vmul.f32 1.0, %v537
    %v539 = vxor.u32 %v460, 2147483648
    %v540 = vmul.f32 %v539, 1.442695
    %v541 = vpow.pop %v540
    %v542 = vadd.f32 %v541, 1.0
    %v543 = vrcp.pop %v542
    %v544 = vmul.f32 1.0, %v543
    %v545 = vtanh.pop %v529
    %v546 = vxor.u32 %v531, 2147483648
    %v547 = vmul.f32 %v546, 1.442695
    %v548 = vpow.pop %v547
    %v549 = vadd.f32 %v548, 1.0
    %v550 = vrcp.pop %v549
    %v551 = vmul.f32 1.0, %v550
    %v552 = vmul.f32 %v544, %v241
    %v553 = vmul.f32 %v538, %v545
    %v554 = vadd.f32 %v552, %v553
    %v555 = vtanh.pop %v554
    %v556 = vmul.f32 %v551, %v555
    %557 = vst [vmem:[%s6] sm:$0xff] %v556
    %558 = vst [vmem:[%s6 + $0x8] sm:$0xff] %v554
    %v559 = vld [vmem:[#allocation2 + $0x8] sm:$0xff]
    %v560 = vld [vmem:[#allocation2 + $0x18] sm:$0xff]
    %v561 = vld [vmem:[#allocation2 + $0x28] sm:$0xff]
    %v562 = vld [vmem:[#allocation2 + $0x38] sm:$0xff]
    %v563 = vld [vmem:[#allocation2 + $0x48] sm:$0xff]
    %v564 = vld [vmem:[#allocation2 + $0x58] sm:$0xff]
    %v565 = vld [vmem:[#allocation2 + $0x68] sm:$0xff]
    %v566 = vld [vmem:[#allocation2 + $0x78] sm:$0xff]
    %v567 = vld [vmem:[#allocation2 + $0x88] sm:$0xff]
    %v568 = vld [vmem:[#allocation2 + $0x98] sm:$0xff]
    %v569 = vld [vmem:[#allocation2 + $0xa8] sm:$0xff]
    %v570 = vld [vmem:[#allocation2 + $0xb8] sm:$0xff]
    %v571 = vld [vmem:[#allocation2 + $0xc8] sm:$0xff]
    %v572 = vld [vmem:[#allocation2 + $0xd8] sm:$0xff]
    %v573 = vld [vmem:[#allocation2 + $0xe8] sm:$0xff]
    %v574 = vld [vmem:[#allocation2 + $0xf8] sm:$0xff]
    %v576 = vlaneseq
    %v577 = vshrl.u32 %v576, 7
    %v578 = vsub.s32 0, %v577
    %v579 = vrot.slane %v56, %v578
    %581 = vmatprep.subr.mxu0 0.0
    %582 = vmatpush1.msra.mxu0 %v559
    %583 = vmatprep.subr.mxu0 0.0
    %584 = vmatpush1.msra.mxu0 %v560
    %585 = vmatprep.subr.mxu0 0.0
    %586 = vmatpush1.msra.mxu0 %v561
    %587 = vmatprep.subr.mxu0 0.0
    %588 = vmatpush1.msra.mxu0 %v562
    %589 = vmatprep.subr.mxu0 0.0
    %590 = vmatpush1.msra.mxu0 %v563
    %591 = vmatprep.subr.mxu0 0.0
    %592 = vmatpush1.msra.mxu0 %v564
    %593 = vmatprep.subr.mxu0 0.0
    %594 = vmatpush1.msra.mxu0 %v565
    %595 = vmatprep.subr.mxu0 0.0
    %596 = vmatpush1.msra.mxu0 %v566
    %597 = vmatprep.subr.mxu0 0.0
    %598 = vmatpush1.msra.mxu0 %v567
    %599 = vmatprep.subr.mxu0 0.0
    %600 = vmatpush1.msra.mxu0 %v568
    %601 = vmatprep.subr.mxu0 0.0
    %602 = vmatpush1.msra.mxu0 %v569
    %603 = vmatprep.subr.mxu0 0.0
    %604 = vmatpush1.msra.mxu0 %v570
    %605 = vmatprep.subr.mxu0 0.0
    %606 = vmatpush1.msra.mxu0 %v571
    %607 = vmatprep.subr.mxu0 0.0
    %608 = vmatpush1.msra.mxu0 %v572
    %609 = vmatprep.subr.mxu0 0.0
    %610 = vmatpush1.msra.mxu0 %v573
    %611 = vmatprep.subr.mxu0 0.0
    %612 = vmatpush1.msra.mxu0 %v574
    %613 = vmatprep.subr.mxu0 0.0
    %614 = vmatpush1.msra.mxu0 0.0
    %615 = vmatprep.subr.mxu0 0.0
    %616 = vmatpush1.msra.mxu0 0.0
    %617 = vmatprep.subr.mxu0 0.0
    %618 = vmatpush1.msra.mxu0 0.0
    %619 = vmatprep.subr.mxu0 0.0
    %620 = vmatpush1.msra.mxu0 0.0
    %621 = vmatprep.subr.mxu0 0.0
    %622 = vmatpush1.msra.mxu0 0.0
    %623 = vmatprep.subr.mxu0 0.0
    %624 = vmatpush1.msra.mxu0 0.0
    %625 = vmatprep.subr.mxu0 0.0
    %626 = vmatpush1.msra.mxu0 0.0
    %627 = vmatprep.subr.mxu0 0.0
    %628 = vmatpush1.msra.mxu0 0.0
    %629 = vmatprep.subr.mxu0 0.0
    %630 = vmatpush1.msra.mxu0 0.0
    %631 = vmatprep.subr.mxu0 0.0
    %632 = vmatpush1.msra.mxu0 0.0
    %633 = vmatprep.subr.mxu0 0.0
    %634 = vmatpush1.msra.mxu0 0.0
    %635 = vmatprep.subr.mxu0 0.0
    %636 = vmatpush1.msra.mxu0 0.0
    %637 = vmatprep.subr.mxu0 0.0
    %638 = vmatpush1.msra.mxu0 0.0
    %639 = vmatprep.subr.mxu0 0.0
    %640 = vmatpush1.msra.mxu0 0.0
    %641 = vmatprep.subr.mxu0 0.0
    %642 = vmatpush1.msra.mxu0 0.0
    %643 = vmatprep.subr.mxu0 0.0
    %644 = vmatpush1.msra.mxu0 0.0
    %645 = vmatprep.mubr.f32.mxu0 0.0
    %646 = vmatmul.mubr.f32.gmra.mrb[0].mxu0 %v556
    %v647 = vpop.f32.mrb[0].mxu0
    %v648 = vadd.f32 %v579, %v647
    %v649 = vpop.f32.mrb[0].mxu0
    %650 = vdwg.mxu0
    %651 = vst [vmem:[%s7] sm:$0xff] %v648
    // Predicated region
    $region34: #{custom_lstm_forward.1} parent=1 // pred_check
      _
    $region35: #{custom_lstm_forward.1} parent=1 // pred_check_branch
      %653 = sbr.rel (0) target = $region37
    $region36: #{custom_lstm_forward.1} parent=1 // pred_region
      _
    $region37: #{custom_lstm_forward.1} parent=1 // pred_fallthru
      _
    // Predicated region
    $region38: #{custom_lstm_forward.1} parent=1 // pred_check
      _
    $region39: #{custom_lstm_forward.1} parent=1 // pred_check_branch
      %655 = sbr.rel (0) target = $region41
    $region40: #{custom_lstm_forward.1} parent=1 // pred_region
      _
    $region41: #{custom_lstm_forward.1} parent=1 // pred_fallthru
      _
    // Predicated region
    $region42: #{custom_lstm_forward.1} parent=1 // pred_check
      _
    $region43: #{custom_lstm_forward.1} parent=1 // pred_check_branch
      %657 = sbr.rel (0) target = $region45
    $region44: #{custom_lstm_forward.1} parent=1 // pred_region
      _
    $region45: #{custom_lstm_forward.1} parent=1 // pred_fallthru
      _
    // Predicated region
    $region46: #{custom_lstm_forward.1} parent=1 // pred_check
      _
    $region47: #{custom_lstm_forward.1} parent=1 // pred_check_branch
      %659 = sbr.rel (0) target = $region49
    $region48: #{custom_lstm_forward.1} parent=1 // pred_region
      _
    $region49: #{custom_lstm_forward.1} parent=1 // pred_fallthru
      _
    %660 = vsyncpa [#allocation3], 1
    %661 = vsyncpa [#allocation5], 1

</llo_original>
